<compile_context>
chip_gen: v7x
topology: tpu7x:2x2x1
jax: 0.10.0
libtpu: 0.0.40
codegen_flags: <defaults>
</compile_context>

<pallas_src>
import functools

import jax
import jax.numpy as jnp
from jax.experimental import pallas as pl
from jax.experimental.pallas import tpu as pltpu


def _round_up(x, m):
    return ((x + m - 1) // m) * m


def _timestep_embedding_kernel(*refs, has_cond):
    """One batch tile of the fused forward.

    With cond:    (s, c, w1, wc1, b1, w2, b2, out)
    Without cond: (s,     w1,      b1, w2, b2, out)

      s   : (TB, C)        bf16   sample tile
      c   : (TB, Ccond)    bf16   timestep_cond tile
      w1  : (C, Np)        bf16   linear_1 weight, out-dim zero-padded to Np
      wc1 : (Ccond, Np)    bf16   cond_proj folded into linear_1 (Wc @ W1)
      b1  : (1, Np)        f32
      w2  : (Np, Np)       bf16   linear_2 weight, zero-padded
      b2  : (1, Np)        f32
      out : (TB, Np)
    """
    if has_cond:
        s_ref, c_ref, w1_ref, wc1_ref, b1_ref, w2_ref, b2_ref, o_ref = refs
    else:
        s_ref, w1_ref, b1_ref, w2_ref, b2_ref, o_ref = refs

    # linear_1 (+ folded cond_proj); accumulate in f32 on the MXU
    h = jnp.dot(s_ref[...], w1_ref[...], preferred_element_type=jnp.float32)
    if has_cond:
        h = h + jnp.dot(c_ref[...], wc1_ref[...], preferred_element_type=jnp.float32)
    h = h + b1_ref[...]
    h = h * jax.nn.sigmoid(h)                       # SiLU in f32 (EUP + VPU)

    # linear_2
    o = jnp.dot(h.astype(jnp.bfloat16), w2_ref[...],
                preferred_element_type=jnp.float32) + b2_ref[...]
    o_ref[...] = o.astype(o_ref.dtype)


def prepare_params(params, channel, time_embed_dim, cond_proj_dim):
    """Fold cond_proj into linear_1, zero-pad the output dim to a 128 multiple,
    cast weights to bf16 (biases stay f32). One-time cost, done outside the hot path."""
    D = time_embed_dim
    Np = _round_up(D, 128)
    has_cond = cond_proj_dim is not None and cond_proj_dim > 0

    w1 = params["w1"].astype(jnp.float32)                               # (C, D)
    w1p = jnp.zeros((channel, Np), jnp.float32).at[:, :D].set(w1)
    w2p = jnp.zeros((Np, Np), jnp.float32).at[:D, :D].set(
        params["w2"].astype(jnp.float32))
    b1 = jnp.zeros((1, Np), jnp.float32).at[:, :D].set(
        params["b1"].reshape(1, -1).astype(jnp.float32))
    b2 = jnp.zeros((1, Np), jnp.float32).at[:, :D].set(
        params["b2"].reshape(1, -1).astype(jnp.float32))

    prepped = {
        "w1p": w1p.astype(jnp.bfloat16),
        "w2p": w2p.astype(jnp.bfloat16),
        "b1": b1,
        "b2": b2,
        "channel": channel,
        "time_embed_dim": D,
        "Np": Np,
        "cond_proj_dim": cond_proj_dim if has_cond else None,
    }
    if has_cond:
        # (s + c @ wc) @ w1 == s @ w1 + c @ (wc @ w1)   (fold done once, in f32)
        wcw1 = params["wc"].astype(jnp.float32) @ w1                    # (Ccond, D)
        wcw1p = jnp.zeros((cond_proj_dim, Np), jnp.float32).at[:, :D].set(wcw1)
        prepped["wc1p"] = wcw1p.astype(jnp.bfloat16)
    return prepped


def timestep_embedding(sample, timestep_cond, prepped, *, block_b=128):
    """sample: (B, channel); timestep_cond: (B, cond_proj_dim) or None.

    block_b: batch tile target. 128 is a safe default for all chips; on v6e/v7x
    with large B, 256 halves the grid-step count (re-check the v7x VMEM budget).
    """
    B, C = sample.shape
    D = prepped["time_embed_dim"]
    Np = prepped["Np"]
    cond_dim = prepped["cond_proj_dim"]
    has_cond = cond_dim is not None

    if C != prepped["channel"]:
        raise ValueError(f"sample channel {C} != prepared channel {prepped['channel']}")
    if has_cond:
        if timestep_cond is None or timestep_cond.shape != (B, cond_dim):
            raise ValueError("prepared with cond_proj_dim="
                             f"{cond_dim}, got timestep_cond="
                             f"{None if timestep_cond is None else timestep_cond.shape}")
    elif timestep_cond is not None:
        raise ValueError("prepared without cond_proj but timestep_cond was passed")

    out_dtype = sample.dtype
    s = sample.astype(jnp.bfloat16)                     # halves activation DMA bytes
    c = timestep_cond.astype(jnp.bfloat16) if has_cond else None

    # Batch tile: multiple of 8 (sublane rule); if that exceeds B, use the full
    # batch as a single block (block dim == full array dim is always legal).
    TB = _round_up(min(block_b, B), 8)
    if TB > B:
        TB = B
    grid_b = pl.cdiv(B, TB)

    # --- VMEM footprint (weights single-buffered, activations/out double-buffered) ---
    w_bytes = (prepped["w1p"].size + prepped["w2p"].size
               + (prepped["wc1p"].size if has_cond else 0)) * 2
    bias_bytes = (prepped["b1"].size + prepped["b2"].size) * 4
    act_bytes = 2 * TB * C * 2 + (2 * TB * cond_dim * 2 if has_cond else 0)
    out_bytes = 2 * TB * Np * jnp.dtype(out_dtype).itemsize
    footprint = w_bytes + bias_bytes + act_bytes + out_bytes
    if footprint > 56 * 1024 * 1024:
        # TODO(synk): tile linear_2 over its output dim (second grid axis, h in VMEM
        # scratch) instead of keeping the full (Np, Np) w2 resident.
        raise ValueError(f"resident VMEM footprint {footprint/2**20:.1f} MiB exceeds the "
                         "v7x 64 MiB ceiling; reduce block_b or tile the output dim")
    vmem_limit = min(int(footprint) + (8 << 20), 128 << 20)

    resident = pl.Buffered(1)   # constant index_map -> second pipeline buffer is never used

    in_specs = [pl.BlockSpec((TB, C), lambda i: (i, 0))]
    args = [s]
    if has_cond:
        in_specs.append(pl.BlockSpec((TB, cond_dim), lambda i: (i, 0)))
        args.append(c)
    in_specs.append(pl.BlockSpec((C, Np), lambda i: (0, 0), pipeline_mode=resident))
    args.append(prepped["w1p"])
    if has_cond:
        in_specs.append(pl.BlockSpec((cond_dim, Np), lambda i: (0, 0), pipeline_mode=resident))
        args.append(prepped["wc1p"])
    in_specs += [
        pl.BlockSpec((1, Np), lambda i: (0, 0), pipeline_mode=resident),
        pl.BlockSpec((Np, Np), lambda i: (0, 0), pipeline_mode=resident),
        pl.BlockSpec((1, Np), lambda i: (0, 0), pipeline_mode=resident),
    ]
    args += [prepped["b1"], prepped["w2p"], prepped["b2"]]

    K = C + (cond_dim if has_cond else 0)
    flops = 2 * B * (K * D + D * D)
    bytes_accessed = (B * C * 2 + (B * cond_dim * 2 if has_cond else 0)
                      + w_bytes + bias_bytes
                      + B * Np * jnp.dtype(out_dtype).itemsize)

    out = pl.pallas_call(
        functools.partial(_timestep_embedding_kernel, has_cond=has_cond),
        out_shape=jax.ShapeDtypeStruct((B, Np), out_dtype),
        grid_spec=pltpu.PrefetchScalarGridSpec(
            num_scalar_prefetch=0,
            grid=(grid_b,),
            in_specs=in_specs,
            out_specs=pl.BlockSpec((TB, Np), lambda i: (i, 0)),   # lane-dense (Np % 128 == 0)
        ),
        compiler_params=pltpu.CompilerParams(
            # Sharding 1-2 tiles across v7x's two TCs just duplicates the weight DMA.
            dimension_semantics=(("parallel",) if grid_b >= 8 else ("arbitrary",)),
            vmem_limit_bytes=vmem_limit,
        ),
        cost_estimate=pl.CostEstimate(
            flops=flops, transcendentals=B * D, bytes_accessed=int(bytes_accessed)),
    )(*args)

    # Batch dim is never padded; only strip feature padding when D % 128 != 0.
    return out if Np == D else out[:, :D]


# ----------------------------- test scaffolding -----------------------------

def init_params(key, channel, time_embed_dim, cond_proj_dim):
    """Synthetic parameters in (in, out) layout.

    NOTE: the PyTorch module zero-inits cond_proj.weight; we use a RANDOM wc here
    so the folded cond_proj path is actually exercised by the correctness check."""
    k0, k1, k2, k3, k4 = jax.random.split(key, 5)
    wc = jax.random.normal(k0, (cond_proj_dim, channel), jnp.float32) * 0.02
    w1 = jax.random.normal(k1, (channel, time_embed_dim), jnp.float32) * 0.02
    b1 = jax.random.normal(k2, (time_embed_dim,), jnp.float32) * 0.02
    w2 = jax.random.normal(k3, (time_embed_dim, time_embed_dim), jnp.float32) * 0.02
    b2 = jax.random.normal(k4, (time_embed_dim,), jnp.float32) * 0.02
    return {"wc": wc, "w1": w1, "b1": b1, "w2": w2, "b2": b2}


def reference(sample, timestep_cond, p):
    x = sample
    if timestep_cond is not None:
        x = x + timestep_cond @ p["wc"]
    h = x @ p["w1"] + p["b1"]
    h = h * jax.nn.sigmoid(h)
    return h @ p["w2"] + p["b2"]


if __name__ == "__main__":
    B, channel, time_embed_dim, cond_proj_dim = 8, 32, 64, 16

    key = jax.random.PRNGKey(0)
    kp, ks, kc, kb, ko = jax.random.split(key, 5)
    params = init_params(kp, channel, time_embed_dim, cond_proj_dim)
    prepped = prepare_params(params, channel, time_embed_dim, cond_proj_dim)

    sample = jax.random.normal(ks, (B, channel), jnp.float32)
    cond = jax.random.normal(kc, (B, cond_proj_dim), jnp.float32)

    # 1) main path: single tile, cond_proj folded into linear_1
    out = jax.block_until_ready(timestep_embedding(sample, cond, prepped))
    ref = reference(sample, cond, params)
    assert out.shape == (B, time_embed_dim)
    assert jnp.allclose(out, ref, atol=2e-3, rtol=2e-2), float(jnp.max(jnp.abs(out - ref)))

    # 2) multi-tile grid with ragged last tile + "parallel" batch axis (>= 8 tiles)
    B2 = 70
    sample2 = jax.random.normal(kb, (B2, channel), jnp.float32)
    cond2 = jax.random.normal(kc, (B2, cond_proj_dim), jnp.float32)
    out2 = jax.block_until_ready(timestep_embedding(sample2, cond2, prepped, block_b=8))
    ref2 = reference(sample2, cond2, params)
    assert out2.shape == (B2, time_embed_dim)
    assert jnp.allclose(out2, ref2, atol=2e-3, rtol=2e-2)

    # 3) odd batch smaller than the tile -> single full-extent batch block
    B3 = 13
    sample3 = jax.random.normal(ko, (B3, channel), jnp.float32)
    cond3 = jax.random.normal(kc, (B3, cond_proj_dim), jnp.float32)
    out3 = jax.block_until_ready(timestep_embedding(sample3, cond3, prepped))
    ref3 = reference(sample3, cond3, params)
    assert out3.shape == (B3, time_embed_dim)
    assert jnp.allclose(out3, ref3, atol=2e-3, rtol=2e-2)

    # 4) no-cond path (cond_proj is Optional in the module)
    prepped_nc = prepare_params(params, channel, time_embed_dim, None)
    out4 = jax.block_until_ready(timestep_embedding(sample, None, prepped_nc))
    ref4 = reference(sample, None, params)
    assert jnp.allclose(out4, ref4, atol=2e-3, rtol=2e-2)

    print("KERNEL_OK")
</pallas_src>

<mosaic_0001>
module attributes {stable_mosaic.version = 11 : i64} {
  func.func @_timestep_embedding_kernel(%arg0: i32, %arg1: memref<8x32xbf16, #tpu.memory_space<vmem>>, %arg2: memref<8x16xbf16, #tpu.memory_space<vmem>>, %arg3: memref<32x128xbf16, #tpu.memory_space<vmem>>, %arg4: memref<16x128xbf16, #tpu.memory_space<vmem>>, %arg5: memref<1x128xf32, #tpu.memory_space<vmem>>, %arg6: memref<128x128xbf16, #tpu.memory_space<vmem>>, %arg7: memref<1x128xf32, #tpu.memory_space<vmem>>, %arg8: memref<8x128xf32, #tpu.memory_space<vmem>>) attributes {dimension_semantics = [#tpu.dimension_semantics<arbitrary>], iteration_bounds = array<i64: 1>, scalar_prefetch = 0 : i64, scratch_operands = 0 : i64, tpu.core_type = #tpu.core_type<tc>, window_params = [{transform_indices = @transform_0, window_bounds = array<i64: 8, 32>}, {transform_indices = @transform_1, window_bounds = array<i64: 8, 16>}, {pipeline_mode = #tpu.pipeline_mode<synchronous>, transform_indices = @transform_2, window_bounds = array<i64: 32, 128>}, {pipeline_mode = #tpu.pipeline_mode<synchronous>, transform_indices = @transform_3, window_bounds = array<i64: 16, 128>}, {pipeline_mode = #tpu.pipeline_mode<synchronous>, transform_indices = @transform_4, window_bounds = array<i64: 1, 128>}, {pipeline_mode = #tpu.pipeline_mode<synchronous>, transform_indices = @transform_5, window_bounds = array<i64: 128, 128>}, {pipeline_mode = #tpu.pipeline_mode<synchronous>, transform_indices = @transform_6, window_bounds = array<i64: 1, 128>}, {transform_indices = @transform_7, window_bounds = array<i64: 8, 128>}]} {
    %c0 = arith.constant 0 : index
    %c0_0 = arith.constant 0 : index
    %0 = vector.load %arg1[%c0, %c0_0] : memref<8x32xbf16, #tpu.memory_space<vmem>>, vector<8x32xbf16>
    %c0_1 = arith.constant 0 : index
    %c0_2 = arith.constant 0 : index
    %1 = vector.load %arg3[%c0_1, %c0_2] : memref<32x128xbf16, #tpu.memory_space<vmem>>, vector<32x128xbf16>
    %cst = arith.constant dense<0.000000e+00> : vector<8x128xf32>
    %2 = tpu.matmul %0, %1, %cst {dimension_numbers = #tpu.dot_dimension_numbers<[1], [0], [0], [1], [0, 0, 1, 1], [], []>} : vector<8x32xbf16>, vector<32x128xbf16>, vector<8x128xf32> -> vector<8x128xf32>
    %c0_3 = arith.constant 0 : index
    %c0_4 = arith.constant 0 : index
    %3 = vector.load %arg2[%c0_3, %c0_4] : memref<8x16xbf16, #tpu.memory_space<vmem>>, vector<8x16xbf16>
    %c0_5 = arith.constant 0 : index
    %c0_6 = arith.constant 0 : index
    %4 = vector.load %arg4[%c0_5, %c0_6] : memref<16x128xbf16, #tpu.memory_space<vmem>>, vector<16x128xbf16>
    %cst_7 = arith.constant dense<0.000000e+00> : vector<8x128xf32>
    %5 = tpu.matmul %3, %4, %cst_7 {dimension_numbers = #tpu.dot_dimension_numbers<[1], [0], [0], [1], [0, 0, 1, 1], [], []>} : vector<8x16xbf16>, vector<16x128xbf16>, vector<8x128xf32> -> vector<8x128xf32>
    %6 = arith.addf %2, %5 : vector<8x128xf32>
    %c0_8 = arith.constant 0 : index
    %c0_9 = arith.constant 0 : index
    %7 = vector.load %arg5[%c0_8, %c0_9] : memref<1x128xf32, #tpu.memory_space<vmem>>, vector<1x128xf32>
    %8 = vector.broadcast %7 : vector<1x128xf32> to vector<8x128xf32>
    %9 = arith.addf %6, %8 : vector<8x128xf32>
    %10 = arith.negf %9 : vector<8x128xf32>
    %11 = math.exp %10 : vector<8x128xf32>
    %cst_10 = arith.constant 1.000000e+00 : f32
    %12 = vector.broadcast %cst_10 : f32 to vector<8x128xf32>
    %13 = arith.addf %12, %11 : vector<8x128xf32>
    %14 = arith.divf %12, %13 : vector<8x128xf32>
    %15 = arith.mulf %9, %14 : vector<8x128xf32>
    %16 = arith.truncf %15 : vector<8x128xf32> to vector<8x128xbf16>
    %c0_11 = arith.constant 0 : index
    %c0_12 = arith.constant 0 : index
    %17 = vector.load %arg6[%c0_11, %c0_12] : memref<128x128xbf16, #tpu.memory_space<vmem>>, vector<128x128xbf16>
    %cst_13 = arith.constant dense<0.000000e+00> : vector<8x128xf32>
    %18 = tpu.matmul %16, %17, %cst_13 {dimension_numbers = #tpu.dot_dimension_numbers<[1], [0], [0], [1], [0, 0, 1, 1], [], []>} : vector<8x128xbf16>, vector<128x128xbf16>, vector<8x128xf32> -> vector<8x128xf32>
    %c0_14 = arith.constant 0 : index
    %c0_15 = arith.constant 0 : index
    %19 = vector.load %arg7[%c0_14, %c0_15] : memref<1x128xf32, #tpu.memory_space<vmem>>, vector<1x128xf32>
    %20 = vector.broadcast %19 : vector<1x128xf32> to vector<8x128xf32>
    %21 = arith.addf %18, %20 : vector<8x128xf32>
    %c0_16 = arith.constant 0 : index
    %c0_17 = arith.constant 0 : index
    %22 = vector.load %arg8[%c0_16, %c0_17] : memref<8x128xf32, #tpu.memory_space<vmem>>, vector<8x128xf32>
    tpu.vector_store %arg8[%c0_16, %c0_17], %21 {strides = array<i32>} : memref<8x128xf32, #tpu.memory_space<vmem>>, vector<8x128xf32>,
    return
  }
  func.func @transform_0(%arg0: i32) -> (i32, i32) {
    %c0_i32 = arith.constant 0 : i32
    %c0_i32_0 = arith.constant 0 : i32
    return %arg0, %c0_i32 : i32, i32
  }
  func.func @transform_1(%arg0: i32) -> (i32, i32) {
    %c0_i32 = arith.constant 0 : i32
    %c0_i32_0 = arith.constant 0 : i32
    return %arg0, %c0_i32 : i32, i32
  }
  func.func @transform_2(%arg0: i32) -> (i32, i32) {
    %c0_i32 = arith.constant 0 : i32
    %c0_i32_0 = arith.constant 0 : i32
    %c0_i32_1 = arith.constant 0 : i32
    return %c0_i32, %c0_i32_0 : i32, i32
  }
  func.func @transform_3(%arg0: i32) -> (i32, i32) {
    %c0_i32 = arith.constant 0 : i32
    %c0_i32_0 = arith.constant 0 : i32
    %c0_i32_1 = arith.constant 0 : i32
    return %c0_i32, %c0_i32_0 : i32, i32
  }
  func.func @transform_4(%arg0: i32) -> (i32, i32) {
    %c0_i32 = arith.constant 0 : i32
    %c0_i32_0 = arith.constant 0 : i32
    %c0_i32_1 = arith.constant 0 : i32
    return %c0_i32, %c0_i32_0 : i32, i32
  }
  func.func @transform_5(%arg0: i32) -> (i32, i32) {
    %c0_i32 = arith.constant 0 : i32
    %c0_i32_0 = arith.constant 0 : i32
    %c0_i32_1 = arith.constant 0 : i32
    return %c0_i32, %c0_i32_0 : i32, i32
  }
  func.func @transform_6(%arg0: i32) -> (i32, i32) {
    %c0_i32 = arith.constant 0 : i32
    %c0_i32_0 = arith.constant 0 : i32
    %c0_i32_1 = arith.constant 0 : i32
    return %c0_i32, %c0_i32_0 : i32, i32
  }
  func.func @transform_7(%arg0: i32) -> (i32, i32) {
    %c0_i32 = arith.constant 0 : i32
    %c0_i32_0 = arith.constant 0 : i32
    return %arg0, %c0_i32 : i32, i32
  }
}

</mosaic_0001>

<llo_original>
// kernel: tpu_custom_call.1
$region0: #{tpu_custom_call.1}
  #allocation0 [shape = 'u32[]', space=smem, size = 0x4, offset = 0x4, fixed_abs, tag = 'smem constant byte address 0x4 - core index']
  #allocation1 [shape = 'u32[144,128]{1,0:T(1,128)}', space=vmem, size = 0x12000, scoped, tag = 'internal scratch']
  %s0 = inlined_call_operand.hbm [shape: bf16[8,32], index: 0, kind: input, shape index: {}]
  %s1 = inlined_call_operand.hbm [shape: bf16[8,16], index: 1, kind: input, shape index: {}]
  %s2 = inlined_call_operand.hbm [shape: bf16[32,128], index: 2, kind: input, shape index: {}]
  %s3 = inlined_call_operand.vmem [shape: bf16[16,128], index: 3, kind: input, shape index: {}]
  %s4 = inlined_call_operand.vmem [shape: f32[1,128], index: 4, kind: input, shape index: {}]
  %s5 = inlined_call_operand.hbm [shape: bf16[128,128], index: 5, kind: input, shape index: {}]
  %s6 = inlined_call_operand.vmem [shape: f32[1,128], index: 6, kind: input, shape index: {}]
  %s7 = inlined_call_operand.hbm [shape: f32[8,128], index: 7, kind: output, shape index: {}]
  %s8 = sld [smem:[#allocation0]]
  $region54: #{tpu_custom_call.1} parent=0
    _
  %s10 = ssub.s32 1, %s8
  %s11 = scalar_select 0, %s10, %s8
  $region1: #{tpu_custom_call.1} parent=0
    #allocation2 [shape = 'u8[2048]{0}', space=vmem, size = 0x800, scoped, tag = 'input window, operand 0, single buffered']
    #allocation3 [shape = 's32[1]{0}', space=sflag, size = 0x4, scoped, tag = 'scoped memory for tpu_custom_call.1']
    #allocation4 [shape = 's32[1]{0}', space=sflag, size = 0x4, scoped, tag = 'scoped memory for tpu_custom_call.1']
    #allocation5 [shape = 'u8[2048]{0}', space=vmem, size = 0x800, scoped, tag = 'input window, operand 1, single buffered']
    #allocation6 [shape = 's32[1]{0}', space=sflag, size = 0x4, scoped, tag = 'scoped memory for tpu_custom_call.1']
    #allocation7 [shape = 'u8[8192]{0}', space=vmem, size = 0x2000, scoped, tag = 'input window, operand 2, single buffered']
    #allocation8 [shape = 'u8[32768]{0}', space=vmem, size = 0x8000, scoped, tag = 'input window, operand 5, single buffered']
    #allocation9 [shape = 's32[1]{0}', space=sflag, size = 0x4, scoped, tag = 'scoped memory for tpu_custom_call.1']
    #allocation10 [shape = 'u8[4096]{0}', space=vmem, size = 0x1000, scoped, tag = 'output window, operand 0, single buffered']
    %12 = vsyncpa [#allocation3], 0
    %13 = vsyncpa [#allocation6], 0
    %14 = vsyncpa [#allocation9], 0
    %15 = vsyncpa [#allocation4], 0
    // Predicated region
    $region2: #{tpu_custom_call.1} parent=1 // pred_check
      _
    $region3: #{tpu_custom_call.1} parent=1 // pred_check_branch
      %17 = sbr.rel (0) target = $region5
    $region4: #{tpu_custom_call.1} parent=1 // pred_region
      %s19 = ssub.s32 64, 64
      %20 = vsyncadd [#allocation3], %s19
      %s22 = sshll.u32 [#allocation2], 4
      %s23 = int_to_ptr.vmem [resolvable:$true] %s22
      %25 = dma.hbm_to_vmem [thread:$0]  %s0, 64, %s23, [#allocation3]
    $region5: #{tpu_custom_call.1} parent=1 // pred_fallthru
      _
    // Predicated region
    $region6: #{tpu_custom_call.1} parent=1 // pred_check
      _
    $region7: #{tpu_custom_call.1} parent=1 // pred_check_branch
      %27 = sbr.rel (0) target = $region9
    $region8: #{tpu_custom_call.1} parent=1 // pred_region
      %s29 = ssub.s32 64, 64
      %30 = vsyncadd [#allocation6], %s29
      %s32 = sshll.u32 [#allocation5], 4
      %s33 = int_to_ptr.vmem [resolvable:$true] %s32
      %35 = dma.hbm_to_vmem [thread:$0]  %s1, 64, %s33, [#allocation6]
    $region9: #{tpu_custom_call.1} parent=1 // pred_fallthru
      _
    // Predicated region
    $region10: #{tpu_custom_call.1} parent=1 // pred_check
      _
    $region11: #{tpu_custom_call.1} parent=1 // pred_check_branch
      %37 = sbr.rel (0) target = $region13
    $region12: #{tpu_custom_call.1} parent=1 // pred_region
      %s39 = ssub.s32 256, 256
      %40 = vsyncadd [#allocation6], %s39
      %s41 = sshll.u32 [#allocation7], 4
      %s42 = int_to_ptr.vmem [resolvable:$true] %s41
      %47 = dma.hbm_to_vmem [thread:$0]  %s2, 256, %s42, [#allocation6], 64, 64, 4
    $region13: #{tpu_custom_call.1} parent=1 // pred_fallthru
      _
    // Predicated region
    $region14: #{tpu_custom_call.1} parent=1 // pred_check
      _
    $region15: #{tpu_custom_call.1} parent=1 // pred_check_branch
      %49 = sbr.rel (0) target = $region17
    $region16: #{tpu_custom_call.1} parent=1 // pred_region
      _
    $region17: #{tpu_custom_call.1} parent=1 // pred_fallthru
      _
    // Predicated region
    $region18: #{tpu_custom_call.1} parent=1 // pred_check
      _
    $region19: #{tpu_custom_call.1} parent=1 // pred_check_branch
      %51 = sbr.rel (0) target = $region21
    $region20: #{tpu_custom_call.1} parent=1 // pred_region
      _
    $region21: #{tpu_custom_call.1} parent=1 // pred_fallthru
      _
    // Predicated region
    $region22: #{tpu_custom_call.1} parent=1 // pred_check
      _
    $region23: #{tpu_custom_call.1} parent=1 // pred_check_branch
      %53 = sbr.rel (0) target = $region25
    $region24: #{tpu_custom_call.1} parent=1 // pred_region
      %s55 = ssub.s32 1024, 1024
      %56 = vsyncadd [#allocation9], %s55
      %s57 = sshll.u32 [#allocation8], 4
      %s58 = int_to_ptr.vmem [resolvable:$true] %s57
      %63 = dma.hbm_to_vmem [thread:$0]  %s5, 1024, %s58, [#allocation9], 64, 64, 4
    $region25: #{tpu_custom_call.1} parent=1 // pred_fallthru
      _
    // Predicated region
    $region26: #{tpu_custom_call.1} parent=1 // pred_check
      _
    $region27: #{tpu_custom_call.1} parent=1 // pred_check_branch
      %65 = sbr.rel (0) target = $region29
    $region28: #{tpu_custom_call.1} parent=1 // pred_region
      _
    $region29: #{tpu_custom_call.1} parent=1 // pred_fallthru
      _
    // Predicated region
    $region30: #{tpu_custom_call.1} parent=1 // pred_check
      _
    $region31: #{tpu_custom_call.1} parent=1 // pred_check_branch
      %67 = sbr.rel (0) target = $region33
    $region32: #{tpu_custom_call.1} parent=1 // pred_region
      %68 = dma.done [#allocation3], 64
    $region33: #{tpu_custom_call.1} parent=1 // pred_fallthru
      _
    // Predicated region
    $region34: #{tpu_custom_call.1} parent=1 // pred_check
      _
    $region35: #{tpu_custom_call.1} parent=1 // pred_check_branch
      %70 = sbr.rel (0) target = $region37
    $region36: #{tpu_custom_call.1} parent=1 // pred_region
      %71 = dma.done [#allocation6], 64
    $region37: #{tpu_custom_call.1} parent=1 // pred_fallthru
      _
    // Predicated region
    $region38: #{tpu_custom_call.1} parent=1 // pred_check
      _
    $region39: #{tpu_custom_call.1} parent=1 // pred_check_branch
      %73 = sbr.rel (0) target = $region41
    $region40: #{tpu_custom_call.1} parent=1 // pred_region
      %74 = dma.done [#allocation6], 256
    $region41: #{tpu_custom_call.1} parent=1 // pred_fallthru
      _
    // Predicated region
    $region42: #{tpu_custom_call.1} parent=1 // pred_check
      _
    $region43: #{tpu_custom_call.1} parent=1 // pred_check_branch
      %76 = sbr.rel (0) target = $region45
    $region44: #{tpu_custom_call.1} parent=1 // pred_region
      %77 = dma.done [#allocation9], 1024
    $region45: #{tpu_custom_call.1} parent=1 // pred_fallthru
      _
    %v79 = vld [vmem:[#allocation2] sm:$0xf]
    %v80 = vld [vmem:[#allocation7] sm:$0xf]
    %v81 = vld [vmem:[#allocation7 + $0x4] sm:$0xf]
    %v82 = vld [vmem:[#allocation7 + $0x8] sm:$0xf]
    %v83 = vld [vmem:[#allocation7 + $0xc] sm:$0xf]
    %v84 = vld [vmem:[#allocation5] sm:$0xf]
    %v85 = vld [vmem:[%s3] sm:$0xf]
    %v86 = vld [vmem:[%s3 + $0x4] sm:$0xf]
    %v89 = vunpack.c.l.b16 %v85
    %v90 = vunpack.c.l.b16 %v86
    %v91 = vpack.c.b16 %v90, %v89
    %vm93 = vcmask 130048
    %v95 = vsel %vm93, %v84, 0
    %97 = vmatprep.subr.bf16.mxu0 0
    %98 = vmatpush1.bf16.msra.mxu0 %v91
    %99 = vmatprep.subr.bf16.mxu0 0
    %100 = vmatpush1.bf16.msra.mxu0 0
    %101 = vmatprep.subr.bf16.mxu0 0
    %102 = vmatpush1.bf16.msra.mxu0 0
    %103 = vmatprep.subr.bf16.mxu0 0
    %104 = vmatpush1.bf16.msra.mxu0 0
    %105 = vmatprep.subr.bf16.mxu0 0
    %106 = vmatpush1.bf16.msra.mxu0 0
    %107 = vmatprep.subr.bf16.mxu0 0
    %108 = vmatpush1.bf16.msra.mxu0 0
    %109 = vmatprep.subr.bf16.mxu0 0
    %110 = vmatpush1.bf16.msra.mxu0 0
    %111 = vmatprep.subr.bf16.mxu0 0
    %112 = vmatpush1.bf16.msra.mxu0 0
    %113 = vmatprep.subr.bf16.mxu0 0
    %114 = vmatpush1.bf16.msra.mxu0 0
    %115 = vmatprep.subr.bf16.mxu0 0
    %116 = vmatpush1.bf16.msra.mxu0 0
    %117 = vmatprep.subr.bf16.mxu0 0
    %118 = vmatpush1.bf16.msra.mxu0 0
    %119 = vmatprep.subr.bf16.mxu0 0
    %120 = vmatpush1.bf16.msra.mxu0 0
    %121 = vmatprep.subr.bf16.mxu0 0
    %122 = vmatpush1.bf16.msra.mxu0 0
    %123 = vmatprep.subr.bf16.mxu0 0
    %124 = vmatpush1.bf16.msra.mxu0 0
    %125 = vmatprep.subr.bf16.mxu0 0
    %126 = vmatpush1.bf16.msra.mxu0 0
    %127 = vmatprep.subr.bf16.mxu0 0
    %128 = vmatpush1.bf16.msra.mxu0 0
    %129 = vmatprep.mubr.bf16.mxu0 0
    %130 = vmatmul.mubr.bf16.gmra.mrb[0].mxu0 %v95
    %v131 = vpop.f32.mrb[0].mxu0
    %v132 = vadd.f32 0.0, %v131
    %v133 = vpop.f32.mrb[0].mxu0
    %v134 = vpop.f32.mrb[0].mxu0
    %v135 = vpop.f32.mrb[0].mxu0
    %136 = vdwg.mxu0
    %v141 = vunpack.c.l.b16 %v80
    %v142 = vunpack.c.l.b16 %v81
    %v143 = vunpack.c.l.b16 %v82
    %v144 = vunpack.c.l.b16 %v83
    %v145 = vpack.c.b16 %v142, %v141
    %v146 = vpack.c.b16 %v144, %v143
    %vm149 = vcmask 261120
    %v151 = vsel %vm149, %v79, 0
    %153 = vmatprep.subr.bf16.mxu0 0
    %154 = vmatpush1.bf16.msra.mxu0 %v145
    %155 = vmatprep.subr.bf16.mxu0 0
    %156 = vmatpush1.bf16.msra.mxu0 %v146
    %157 = vmatprep.subr.bf16.mxu0 0
    %158 = vmatpush1.bf16.msra.mxu0 0
    %159 = vmatprep.subr.bf16.mxu0 0
    %160 = vmatpush1.bf16.msra.mxu0 0
    %161 = vmatprep.subr.bf16.mxu0 0
    %162 = vmatpush1.bf16.msra.mxu0 0
    %163 = vmatprep.subr.bf16.mxu0 0
    %164 = vmatpush1.bf16.msra.mxu0 0
    %165 = vmatprep.subr.bf16.mxu0 0
    %166 = vmatpush1.bf16.msra.mxu0 0
    %167 = vmatprep.subr.bf16.mxu0 0
    %168 = vmatpush1.bf16.msra.mxu0 0
    %169 = vmatprep.subr.bf16.mxu0 0
    %170 = vmatpush1.bf16.msra.mxu0 0
    %171 = vmatprep.subr.bf16.mxu0 0
    %172 = vmatpush1.bf16.msra.mxu0 0
    %173 = vmatprep.subr.bf16.mxu0 0
    %174 = vmatpush1.bf16.msra.mxu0 0
    %175 = vmatprep.subr.bf16.mxu0 0
    %176 = vmatpush1.bf16.msra.mxu0 0
    %177 = vmatprep.subr.bf16.mxu0 0
    %178 = vmatpush1.bf16.msra.mxu0 0
    %179 = vmatprep.subr.bf16.mxu0 0
    %180 = vmatpush1.bf16.msra.mxu0 0
    %181 = vmatprep.subr.bf16.mxu0 0
    %182 = vmatpush1.bf16.msra.mxu0 0
    %183 = vmatprep.subr.bf16.mxu0 0
    %184 = vmatpush1.bf16.msra.mxu0 0
    %185 = vmatprep.mubr.bf16.mxu0 0
    %186 = vmatmul.mubr.bf16.gmra.mrb[0].mxu0 %v151
    %v187 = vpop.f32.mrb[0].mxu0
    %v188 = vadd.f32 %v132, %v187
    %v189 = vpop.f32.mrb[0].mxu0
    %v190 = vpop.f32.mrb[0].mxu0
    %v191 = vpop.f32.mrb[0].mxu0
    %192 = vdwg.mxu0
    %v193 = vld [vmem:[%s4] sm:$0x1]
    %v195 = vlaneseq
    %v196 = vshrl.u32 %v195, 7
    %v197 = vsub.s32 0, %v196
    %v198 = vrot.slane %v193, %v197
    %v200 = vadd.f32 %v188, %v198
    %v201 = vxor.u32 %v200, 2147483648
    %v202 = vmul.f32 %v201, 1.442695
    %v203 = vpow.pop %v202
    %v204 = vadd.f32 %v203, 1.0
    %v205 = vrcp.pop %v204
    %v206 = vmul.f32 1.0, %v205
    %v207 = vmul.f32 %v200, %v206
    %v208 = vpack.c.bf16 %v207, %v207
    %v209 = vld [vmem:[#allocation8] sm:$0xf]
    %v210 = vld [vmem:[#allocation8 + $0x4] sm:$0xf]
    %v211 = vld [vmem:[#allocation8 + $0x8] sm:$0xf]
    %v212 = vld [vmem:[#allocation8 + $0xc] sm:$0xf]
    %v213 = vld [vmem:[#allocation8 + $0x10] sm:$0xf]
    %v214 = vld [vmem:[#allocation8 + $0x14] sm:$0xf]
    %v215 = vld [vmem:[#allocation8 + $0x18] sm:$0xf]
    %v216 = vld [vmem:[#allocation8 + $0x1c] sm:$0xf]
    %v217 = vld [vmem:[#allocation8 + $0x20] sm:$0xf]
    %v218 = vld [vmem:[#allocation8 + $0x24] sm:$0xf]
    %v219 = vld [vmem:[#allocation8 + $0x28] sm:$0xf]
    %v220 = vld [vmem:[#allocation8 + $0x2c] sm:$0xf]
    %v221 = vld [vmem:[#allocation8 + $0x30] sm:$0xf]
    %v222 = vld [vmem:[#allocation8 + $0x34] sm:$0xf]
    %v223 = vld [vmem:[#allocation8 + $0x38] sm:$0xf]
    %v224 = vld [vmem:[#allocation8 + $0x3c] sm:$0xf]
    %v225 = vld [vmem:[%s6] sm:$0x1]
    %v227 = vlaneseq
    %v228 = vshrl.u32 %v227, 7
    %v229 = vsub.s32 0, %v228
    %v230 = vrot.slane %v225, %v229
    %v248 = vunpack.c.l.b16 %v209
    %v249 = vunpack.c.l.b16 %v210
    %v250 = vunpack.c.l.b16 %v211
    %v251 = vunpack.c.l.b16 %v212
    %v252 = vunpack.c.l.b16 %v213
    %v253 = vunpack.c.l.b16 %v214
    %v254 = vunpack.c.l.b16 %v215
    %v255 = vunpack.c.l.b16 %v216
    %v256 = vunpack.c.l.b16 %v217
    %v257 = vunpack.c.l.b16 %v218
    %v258 = vunpack.c.l.b16 %v219
    %v259 = vunpack.c.l.b16 %v220
    %v260 = vunpack.c.l.b16 %v221
    %v261 = vunpack.c.l.b16 %v222
    %v262 = vunpack.c.l.b16 %v223
    %v263 = vunpack.c.l.b16 %v224
    %v264 = vpack.c.b16 %v249, %v248
    %v265 = vpack.c.b16 %v251, %v250
    %v266 = vpack.c.b16 %v253, %v252
    %v267 = vpack.c.b16 %v255, %v254
    %v268 = vpack.c.b16 %v257, %v256
    %v269 = vpack.c.b16 %v259, %v258
    %v270 = vpack.c.b16 %v261, %v260
    %v271 = vpack.c.b16 %v263, %v262
    %280 = vmatprep.subr.bf16.mxu0 0
    %281 = vmatpush1.bf16.msra.mxu0 %v264
    %282 = vmatprep.subr.bf16.mxu0 0
    %283 = vmatpush1.bf16.msra.mxu0 %v265
    %284 = vmatprep.subr.bf16.mxu0 0
    %285 = vmatpush1.bf16.msra.mxu0 %v266
    %286 = vmatprep.subr.bf16.mxu0 0
    %287 = vmatpush1.bf16.msra.mxu0 %v267
    %288 = vmatprep.subr.bf16.mxu0 0
    %289 = vmatpush1.bf16.msra.mxu0 %v268
    %290 = vmatprep.subr.bf16.mxu0 0
    %291 = vmatpush1.bf16.msra.mxu0 %v269
    %292 = vmatprep.subr.bf16.mxu0 0
    %293 = vmatpush1.bf16.msra.mxu0 %v270
    %294 = vmatprep.subr.bf16.mxu0 0
    %295 = vmatpush1.bf16.msra.mxu0 %v271
    %296 = vmatprep.subr.bf16.mxu0 0
    %297 = vmatpush1.bf16.msra.mxu0 0
    %298 = vmatprep.subr.bf16.mxu0 0
    %299 = vmatpush1.bf16.msra.mxu0 0
    %300 = vmatprep.subr.bf16.mxu0 0
    %301 = vmatpush1.bf16.msra.mxu0 0
    %302 = vmatprep.subr.bf16.mxu0 0
    %303 = vmatpush1.bf16.msra.mxu0 0
    %304 = vmatprep.subr.bf16.mxu0 0
    %305 = vmatpush1.bf16.msra.mxu0 0
    %306 = vmatprep.subr.bf16.mxu0 0
    %307 = vmatpush1.bf16.msra.mxu0 0
    %308 = vmatprep.subr.bf16.mxu0 0
    %309 = vmatpush1.bf16.msra.mxu0 0
    %310 = vmatprep.subr.bf16.mxu0 0
    %311 = vmatpush1.bf16.msra.mxu0 0
    %312 = vmatprep.mubr.bf16.mxu0 0
    %313 = vmatmul.mubr.bf16.gmra.mrb[0].mxu0 %v208
    %v314 = vpop.f32.mrb[0].mxu0
    %v315 = vadd.f32 %v230, %v314
    %v316 = vpop.f32.mrb[0].mxu0
    %v317 = vpop.f32.mrb[0].mxu0
    %v318 = vpop.f32.mrb[0].mxu0
    %319 = vdwg.mxu0
    %320 = vst [vmem:[#allocation10] sm:$0xff] %v315
    // Predicated region
    $region46: #{tpu_custom_call.1} parent=1 // pred_check
      _
    $region47: #{tpu_custom_call.1} parent=1 // pred_check_branch
      %322 = sbr.rel (0) target = $region49
    $region48: #{tpu_custom_call.1} parent=1 // pred_region
      %s324 = ssub.s32 128, 128
      %325 = vsyncadd [#allocation4], %s324
      %s327 = sshll.u32 [#allocation10], 4
      %s328 = int_to_ptr.vmem [resolvable:$true] %s327
      %330 = dma.vmem_to_hbm [thread:$0]  %s328, 128, %s7, [#allocation4]
    $region49: #{tpu_custom_call.1} parent=1 // pred_fallthru
      _
    // Predicated region
    $region50: #{tpu_custom_call.1} parent=1 // pred_check
      _
    $region51: #{tpu_custom_call.1} parent=1 // pred_check_branch
      %332 = sbr.rel (0) target = $region53
    $region52: #{tpu_custom_call.1} parent=1 // pred_region
      %333 = dma.done [#allocation4], 128
    $region53: #{tpu_custom_call.1} parent=1 // pred_fallthru
      _
    %334 = vsyncpa [#allocation3], 1
    %335 = vsyncpa [#allocation6], 1
    %336 = vsyncpa [#allocation9], 1
    %337 = vsyncpa [#allocation4], 1

</llo_original>
